<compile_context>
chip_gen: v6e
topology: v6e:2x2x1
jax: 0.10.0
libtpu: 0.0.40
codegen_flags: <defaults>
</compile_context>

<pallas_src>
import numpy as np
import jax
import jax.numpy as jnp
from jax import lax
from jax.experimental import pallas as pl
from jax.experimental.pallas import tpu as pltpu

EPS = 1e-5


def _make_resblock_kernel(N, H, W, C):
    WC = W * C
    NH = N * H
    inv_count = 1.0 / float(N * H * W)

    def lane_channel_allreduce(row):
        # row: (1, WC) f32, lanes laid out as w*C + c.  Cyclic roll-and-add on
        # the XLU; afterwards every C-wide lane group holds the per-channel
        # total, i.e. the result is already broadcast back to lanes.
        if (W & (W - 1)) == 0:
            shift = C
            while shift < WC:
                row = row + pltpu.roll(row, shift=shift, axis=1)
                shift *= 2
            return row
        acc = row
        for k in range(1, W):
            acc = acc + pltpu.roll(row, shift=k * C, axis=1)
        return acc

    def kernel(x_ref, a1_ref, a2_ref, g1_ref, b1_ref, g2_ref, b2_ref,
               out_ref, xs_ref):
        # x_ref   : (N, H, WC)        input rows (NHWC with W,C merged on lanes)
        # a*_ref  : (3*WC, WC) bf16   row-stacked block-banded conv weights
        # g*/b*   : (1, WC) f32       BN gamma/beta pre-tiled to lanes
        # out_ref : (N, H, WC)
        # xs_ref  : (N, H+2, WC) bf16 scratch with H-halo rows, shared by convs

        def conv_fused(a_ref):
            # lane-concat of the three dy-shifted slabs -> single K=3*WC dot
            patch = jnp.concatenate(
                [xs_ref[:, dy:dy + H, :].reshape(NH, WC) for dy in range(3)],
                axis=1)                                         # (NH, 3*WC) bf16
            return jnp.dot(patch, a_ref[...],
                           preferred_element_type=jnp.float32)  # (NH, WC) f32

        def batchnorm(y, g_ref, b_ref):
            # two-pass training-mode batch statistics, all f32, zero MXU dots
            mean = lane_channel_allreduce(
                jnp.sum(y, axis=0, keepdims=True)) * inv_count
            yc = y - mean
            var = lane_channel_allreduce(
                jnp.sum(yc * yc, axis=0, keepdims=True)) * inv_count
            scale = g_ref[...] * lax.rsqrt(var + EPS)           # (1, WC)
            return yc * scale + b_ref[...]

        # zero only the two halo rows (they stay zero for both convs)
        zrow = jnp.zeros((N, 1, WC), xs_ref.dtype)
        xs_ref[:, 0:1, :] = zrow
        xs_ref[:, H + 1:H + 2, :] = zrow

        # ---- conv1 -> bn1 -> relu (bf16 MXU path, f32 accumulation/stats) ----
        xs_ref[:, 1:H + 1, :] = x_ref[...].astype(xs_ref.dtype)
        y1 = jnp.maximum(batchnorm(conv_fused(a1_ref), g1_ref, b1_ref), 0.0)

        # ---- conv2 -> bn2 (reuse the same halo scratch) ----
        xs_ref[:, 1:H + 1, :] = y1.reshape(N, H, WC).astype(xs_ref.dtype)
        y2 = batchnorm(conv_fused(a2_ref), g2_ref, b2_ref)

        # ---- residual add + relu; re-read x_ref here so the residual is not
        # kept live in vregs across both convs and both BNs ----
        res = x_ref[...].reshape(NH, WC).astype(jnp.float32)
        out = jnp.maximum(y2 + res, 0.0)
        out_ref[...] = out.reshape(N, H, WC).astype(out_ref.dtype)

    return kernel


def _banded_weights(w_hwio, W):
    """(3,3,Cin,Cout) HWIO -> (3*W*Cin, W*Cout) row-stacked block-banded matrix.

    dy-block: A[dy][w_in*Cin+ci, w_out*Cout+co] = K[dy, w_in-w_out+1, ci, co]
    (zero outside the 3-wide band), so W-direction zero padding is baked in.
    """
    mats = []
    for dy in range(3):
        a = None
        for dx in range(3):
            shift = np.eye(W, W, k=1 - dx, dtype=np.float32)  # rows=w_in, cols=w_out
            term = jnp.kron(jnp.asarray(shift), w_hwio[dy, dx].astype(jnp.float32))
            a = term if a is None else a + term
        mats.append(a)
    return jnp.concatenate(mats, axis=0)   # (3*W*Cin, W*Cout)


def residual_block(x_nchw, w1_oihw, w2_oihw, g1, b1, g2, b2):
    """ResidualBlock forward. x_nchw: (N, C, H, W); weights OIHW; returns NCHW."""
    N, C, H, W = x_nchw.shape
    WC = W * C

    # NCHW -> NHWC -> (N, H, W*C) row slabs
    x_rows = jnp.transpose(x_nchw, (0, 2, 3, 1)).reshape(N, H, WC)

    # TODO(synk): for C >= ~32 (real ResNet widths) the banded (WC,WC) weights
    # grow O(W^2 C^2) and inflate FLOPs by W/3 -- switch the conv matmuls to an
    # im2col layout with K = 9*C_in there; the banded trick is only for W*C<=~512.
    w1 = jnp.transpose(w1_oihw, (2, 3, 1, 0))  # OIHW -> HWIO
    w2 = jnp.transpose(w2_oihw, (2, 3, 1, 0))
    a1 = _banded_weights(w1, W).astype(jnp.bfloat16)   # (3*WC, WC) bf16
    a2 = _banded_weights(w2, W).astype(jnp.bfloat16)

    # gamma/beta pre-tiled to the lane layout (w*C + c)
    g1_wc = jnp.tile(g1.reshape(1, C).astype(jnp.float32), (1, W))
    b1_wc = jnp.tile(b1.reshape(1, C).astype(jnp.float32), (1, W))
    g2_wc = jnp.tile(g2.reshape(1, C).astype(jnp.float32), (1, W))
    b2_wc = jnp.tile(b2.reshape(1, C).astype(jnp.float32), (1, W))

    full3 = lambda i: (0, 0, 0)
    full2 = lambda i: (0, 0)

    # TODO(synk): for realistic shapes (and v7x: 2 TensorCores, 64 MiB VMEM)
    # replace grid=(1,) with a strip grid over N/H marked "parallel" and split
    # BN into a stats-accumulation pass + normalize pass so global batch stats
    # survive tiling; also set pipeline_mode=pl.Buffered(1) on the grid-invariant
    # weight specs once a real grid exists.
    out_rows = pl.pallas_call(
        _make_resblock_kernel(N, H, W, C),
        out_shape=jax.ShapeDtypeStruct((N, H, WC), x_nchw.dtype),
        grid=(1,),
        in_specs=[
            pl.BlockSpec((N, H, WC), full3),       # x rows (f32)
            pl.BlockSpec((3 * WC, WC), full2),     # stacked banded conv1 weights
            pl.BlockSpec((3 * WC, WC), full2),     # stacked banded conv2 weights
            pl.BlockSpec((1, WC), full2),          # gamma1 (lane-tiled)
            pl.BlockSpec((1, WC), full2),          # beta1
            pl.BlockSpec((1, WC), full2),          # gamma2
            pl.BlockSpec((1, WC), full2),          # beta2
        ],
        out_specs=pl.BlockSpec((N, H, WC), full3),
        scratch_shapes=[pltpu.VMEM((N, H + 2, WC), jnp.bfloat16)],
        compiler_params=pltpu.CompilerParams(
            dimension_semantics=("arbitrary",)),
    )(x_rows, a1, a2, g1_wc, b1_wc, g2_wc, b2_wc)

    # (N, H, W*C) -> NHWC -> NCHW
    return jnp.transpose(out_rows.reshape(N, H, W, C), (0, 3, 1, 2))


def _reference(x, w1, w2, g1, b1, g2, b2):
    """Pure-JAX f32 reference (NCHW), mirrors the PyTorch module in training mode."""
    def conv(x, w):
        return jax.lax.conv_general_dilated(
            x, w, window_strides=(1, 1), padding=((1, 1), (1, 1)),
            dimension_numbers=("NCHW", "OIHW", "NCHW"))

    def bn(y, g, b):
        mean = jnp.mean(y, axis=(0, 2, 3), keepdims=True)
        var = jnp.mean(jnp.square(y - mean), axis=(0, 2, 3), keepdims=True)
        yn = (y - mean) * jax.lax.rsqrt(var + EPS)
        return yn * g.reshape(1, -1, 1, 1) + b.reshape(1, -1, 1, 1)

    out = jnp.maximum(bn(conv(x, w1), g1, b1), 0.0)
    out = bn(conv(out, w2), g2, b2)
    return jnp.maximum(out + x, 0.0)


if __name__ == "__main__":
    # Small shapes consistent with the module: in_channels == out_channels
    # (downsample=None), stride=1.  W*C = 128 keeps the lane axis dense.
    N, C, H, W = 2, 8, 16, 16

    key = jax.random.PRNGKey(0)
    kx, k1, k2, kg1, kb1, kg2, kb2 = jax.random.split(key, 7)

    x = jax.random.normal(kx, (N, C, H, W), jnp.float32)
    # conv3x3 weights (bias=False), deterministic init
    w1 = jax.random.normal(k1, (C, C, 3, 3), jnp.float32) * 0.1
    w2 = jax.random.normal(k2, (C, C, 3, 3), jnp.float32) * 0.1
    # BatchNorm affine params (perturbed around the PyTorch defaults 1 / 0)
    g1 = 1.0 + 0.1 * jax.random.normal(kg1, (C,), jnp.float32)
    b1 = 0.1 * jax.random.normal(kb1, (C,), jnp.float32)
    g2 = 1.0 + 0.1 * jax.random.normal(kg2, (C,), jnp.float32)
    b2 = 0.1 * jax.random.normal(kb2, (C,), jnp.float32)

    out = residual_block(x, w1, w2, g1, b1, g2, b2)
    out = jax.block_until_ready(out)

    ref = jax.block_until_ready(_reference(x, w1, w2, g1, b1, g2, b2))
    assert out.shape == (N, C, H, W)
    # tolerance reflects the bf16 MXU path (stats/accumulation stay f32)
    assert jnp.allclose(out, ref, atol=5e-2, rtol=5e-2), (
        float(jnp.max(jnp.abs(out - ref))))

    print("KERNEL_OK")
</pallas_src>

<mosaic_0001>
module attributes {stable_mosaic.version = 11 : i64} {
  func.func @kernel(%arg0: i32, %arg1: memref<2x16x128xf32, #tpu.memory_space<vmem>>, %arg2: memref<384x128xbf16, #tpu.memory_space<vmem>>, %arg3: memref<384x128xbf16, #tpu.memory_space<vmem>>, %arg4: memref<1x128xf32, #tpu.memory_space<vmem>>, %arg5: memref<1x128xf32, #tpu.memory_space<vmem>>, %arg6: memref<1x128xf32, #tpu.memory_space<vmem>>, %arg7: memref<1x128xf32, #tpu.memory_space<vmem>>, %arg8: memref<2x16x128xf32, #tpu.memory_space<vmem>>, %arg9: memref<2x18x128xbf16, #tpu.memory_space<vmem>>) attributes {dimension_semantics = [#tpu.dimension_semantics<arbitrary>], iteration_bounds = array<i64: 1>, scalar_prefetch = 0 : i64, scratch_operands = 1 : i64, tpu.core_type = #tpu.core_type<tc>, window_params = [{pipeline_mode = #tpu.pipeline_mode<synchronous>, transform_indices = @transform_0, window_bounds = array<i64: 2, 16, 128>}, {pipeline_mode = #tpu.pipeline_mode<synchronous>, transform_indices = @transform_1, window_bounds = array<i64: 384, 128>}, {pipeline_mode = #tpu.pipeline_mode<synchronous>, transform_indices = @transform_2, window_bounds = array<i64: 384, 128>}, {pipeline_mode = #tpu.pipeline_mode<synchronous>, transform_indices = @transform_3, window_bounds = array<i64: 1, 128>}, {pipeline_mode = #tpu.pipeline_mode<synchronous>, transform_indices = @transform_4, window_bounds = array<i64: 1, 128>}, {pipeline_mode = #tpu.pipeline_mode<synchronous>, transform_indices = @transform_5, window_bounds = array<i64: 1, 128>}, {pipeline_mode = #tpu.pipeline_mode<synchronous>, transform_indices = @transform_6, window_bounds = array<i64: 1, 128>}, {pipeline_mode = #tpu.pipeline_mode<synchronous>, transform_indices = @transform_7, window_bounds = array<i64: 2, 16, 128>}]} {
    %cst = arith.constant 0.000000e+00 : bf16
    %0 = vector.broadcast %cst : bf16 to vector<2x1x128xbf16>
    %c0 = arith.constant 0 : index
    %c0_0 = arith.constant 0 : index
    %c0_1 = arith.constant 0 : index
    %1 = vector.load %arg9[%c0, %c0_0, %c0_1] : memref<2x18x128xbf16, #tpu.memory_space<vmem>>, vector<2x1x128xbf16>
    tpu.vector_store %arg9[%c0, %c0_0, %c0_1], %0 {strides = array<i32>} : memref<2x18x128xbf16, #tpu.memory_space<vmem>>, vector<2x1x128xbf16>,
    %c0_2 = arith.constant 0 : index
    %c17 = arith.constant 17 : index
    %c0_3 = arith.constant 0 : index
    %2 = vector.load %arg9[%c0_2, %c17, %c0_3] : memref<2x18x128xbf16, #tpu.memory_space<vmem>>, vector<2x1x128xbf16>
    tpu.vector_store %arg9[%c0_2, %c17, %c0_3], %0 {strides = array<i32>} : memref<2x18x128xbf16, #tpu.memory_space<vmem>>, vector<2x1x128xbf16>,
    %c0_4 = arith.constant 0 : index
    %c0_5 = arith.constant 0 : index
    %c0_6 = arith.constant 0 : index
    %3 = vector.load %arg1[%c0_4, %c0_5, %c0_6] : memref<2x16x128xf32, #tpu.memory_space<vmem>>, vector<2x16x128xf32>
    %4 = arith.truncf %3 : vector<2x16x128xf32> to vector<2x16x128xbf16>
    %c0_7 = arith.constant 0 : index
    %c1 = arith.constant 1 : index
    %c0_8 = arith.constant 0 : index
    %5 = vector.load %arg9[%c0_7, %c1, %c0_8] : memref<2x18x128xbf16, #tpu.memory_space<vmem>>, vector<2x16x128xbf16>
    tpu.vector_store %arg9[%c0_7, %c1, %c0_8], %4 {strides = array<i32>} : memref<2x18x128xbf16, #tpu.memory_space<vmem>>, vector<2x16x128xbf16>,
    %c0_9 = arith.constant 0 : index
    %c0_10 = arith.constant 0 : index
    %c0_11 = arith.constant 0 : index
    %6 = vector.load %arg9[%c0_9, %c0_10, %c0_11] : memref<2x18x128xbf16, #tpu.memory_space<vmem>>, vector<2x16x128xbf16>
    %7 = vector.shape_cast %6 : vector<2x16x128xbf16> to vector<32x128xbf16>
    %c0_12 = arith.constant 0 : index
    %c1_13 = arith.constant 1 : index
    %c0_14 = arith.constant 0 : index
    %8 = vector.load %arg9[%c0_12, %c1_13, %c0_14] : memref<2x18x128xbf16, #tpu.memory_space<vmem>>, vector<2x16x128xbf16>
    %9 = vector.shape_cast %8 : vector<2x16x128xbf16> to vector<32x128xbf16>
    %c0_15 = arith.constant 0 : index
    %c2 = arith.constant 2 : index
    %c0_16 = arith.constant 0 : index
    %10 = vector.load %arg9[%c0_15, %c2, %c0_16] : memref<2x18x128xbf16, #tpu.memory_space<vmem>>, vector<2x16x128xbf16>
    %11 = vector.shape_cast %10 : vector<2x16x128xbf16> to vector<32x128xbf16>
    %12 = tpu.concatenate %7, %9, %11 in 1 : vector<32x128xbf16>, vector<32x128xbf16>, vector<32x128xbf16> -> vector<32x384xbf16>
    %c0_17 = arith.constant 0 : index
    %c0_18 = arith.constant 0 : index
    %13 = vector.load %arg2[%c0_17, %c0_18] : memref<384x128xbf16, #tpu.memory_space<vmem>>, vector<384x128xbf16>
    %cst_19 = arith.constant dense<0.000000e+00> : vector<32x128xf32>
    %14 = tpu.matmul %12, %13, %cst_19 {dimension_numbers = #tpu.dot_dimension_numbers<[1], [0], [0], [1], [0, 0, 1, 1], [], []>} : vector<32x384xbf16>, vector<384x128xbf16>, vector<32x128xf32> -> vector<32x128xf32>
    %cst_20 = arith.constant dense<0.000000e+00> : vector<128xf32>
    %15 = vector.multi_reduction <add>, %14, %cst_20 [0] : vector<32x128xf32> to vector<128xf32>
    %16 = vector.shape_cast %15 : vector<128xf32> to vector<1x128xf32>
    %c8_i32 = arith.constant 8 : i32
    %17 = tpu.dynamic_rotate %16 by %c8_i32 dim 1 : vector<1x128xf32>, i32 -> vector<1x128xf32>
    %18 = arith.addf %16, %17 : vector<1x128xf32>
    %c16_i32 = arith.constant 16 : i32
    %19 = tpu.dynamic_rotate %18 by %c16_i32 dim 1 : vector<1x128xf32>, i32 -> vector<1x128xf32>
    %20 = arith.addf %18, %19 : vector<1x128xf32>
    %c32_i32 = arith.constant 32 : i32
    %21 = tpu.dynamic_rotate %20 by %c32_i32 dim 1 : vector<1x128xf32>, i32 -> vector<1x128xf32>
    %22 = arith.addf %20, %21 : vector<1x128xf32>
    %c64_i32 = arith.constant 64 : i32
    %23 = tpu.dynamic_rotate %22 by %c64_i32 dim 1 : vector<1x128xf32>, i32 -> vector<1x128xf32>
    %24 = arith.addf %22, %23 : vector<1x128xf32>
    %cst_21 = arith.constant 0.001953125 : f32
    %25 = vector.broadcast %cst_21 : f32 to vector<1x128xf32>
    %26 = arith.mulf %24, %25 : vector<1x128xf32>
    %27 = vector.broadcast %26 : vector<1x128xf32> to vector<32x128xf32>
    %28 = arith.subf %14, %27 : vector<32x128xf32>
    %29 = arith.mulf %28, %28 : vector<32x128xf32>
    %cst_22 = arith.constant dense<0.000000e+00> : vector<128xf32>
    %30 = vector.multi_reduction <add>, %29, %cst_22 [0] : vector<32x128xf32> to vector<128xf32>
    %31 = vector.shape_cast %30 : vector<128xf32> to vector<1x128xf32>
    %c8_i32_23 = arith.constant 8 : i32
    %32 = tpu.dynamic_rotate %31 by %c8_i32_23 dim 1 : vector<1x128xf32>, i32 -> vector<1x128xf32>
    %33 = arith.addf %31, %32 : vector<1x128xf32>
    %c16_i32_24 = arith.constant 16 : i32
    %34 = tpu.dynamic_rotate %33 by %c16_i32_24 dim 1 : vector<1x128xf32>, i32 -> vector<1x128xf32>
    %35 = arith.addf %33, %34 : vector<1x128xf32>
    %c32_i32_25 = arith.constant 32 : i32
    %36 = tpu.dynamic_rotate %35 by %c32_i32_25 dim 1 : vector<1x128xf32>, i32 -> vector<1x128xf32>
    %37 = arith.addf %35, %36 : vector<1x128xf32>
    %c64_i32_26 = arith.constant 64 : i32
    %38 = tpu.dynamic_rotate %37 by %c64_i32_26 dim 1 : vector<1x128xf32>, i32 -> vector<1x128xf32>
    %39 = arith.addf %37, %38 : vector<1x128xf32>
    %cst_27 = arith.constant 0.001953125 : f32
    %40 = vector.broadcast %cst_27 : f32 to vector<1x128xf32>
    %41 = arith.mulf %39, %40 : vector<1x128xf32>
    %c0_28 = arith.constant 0 : index
    %c0_29 = arith.constant 0 : index
    %42 = vector.load %arg4[%c0_28, %c0_29] : memref<1x128xf32, #tpu.memory_space<vmem>>, vector<1x128xf32>
    %cst_30 = arith.constant 9.99999974E-6 : f32
    %43 = vector.broadcast %cst_30 : f32 to vector<1x128xf32>
    %44 = arith.addf %41, %43 : vector<1x128xf32>
    %45 = math.rsqrt %44 : vector<1x128xf32>
    %46 = arith.mulf %42, %45 : vector<1x128xf32>
    %47 = vector.broadcast %46 : vector<1x128xf32> to vector<32x128xf32>
    %48 = arith.mulf %28, %47 : vector<32x128xf32>
    %c0_31 = arith.constant 0 : index
    %c0_32 = arith.constant 0 : index
    %49 = vector.load %arg5[%c0_31, %c0_32] : memref<1x128xf32, #tpu.memory_space<vmem>>, vector<1x128xf32>
    %50 = vector.broadcast %49 : vector<1x128xf32> to vector<32x128xf32>
    %51 = arith.addf %48, %50 : vector<32x128xf32>
    %cst_33 = arith.constant 0.000000e+00 : f32
    %52 = vector.broadcast %cst_33 : f32 to vector<32x128xf32>
    %53 = arith.maximumf %51, %52 : vector<32x128xf32>
    %54 = vector.shape_cast %53 : vector<32x128xf32> to vector<2x16x128xf32>
    %55 = arith.truncf %54 : vector<2x16x128xf32> to vector<2x16x128xbf16>
    %c0_34 = arith.constant 0 : index
    %c1_35 = arith.constant 1 : index
    %c0_36 = arith.constant 0 : index
    %56 = vector.load %arg9[%c0_34, %c1_35, %c0_36] : memref<2x18x128xbf16, #tpu.memory_space<vmem>>, vector<2x16x128xbf16>
    tpu.vector_store %arg9[%c0_34, %c1_35, %c0_36], %55 {strides = array<i32>} : memref<2x18x128xbf16, #tpu.memory_space<vmem>>, vector<2x16x128xbf16>,
    %c0_37 = arith.constant 0 : index
    %c0_38 = arith.constant 0 : index
    %c0_39 = arith.constant 0 : index
    %57 = vector.load %arg9[%c0_37, %c0_38, %c0_39] : memref<2x18x128xbf16, #tpu.memory_space<vmem>>, vector<2x16x128xbf16>
    %58 = vector.shape_cast %57 : vector<2x16x128xbf16> to vector<32x128xbf16>
    %c0_40 = arith.constant 0 : index
    %c1_41 = arith.constant 1 : index
    %c0_42 = arith.constant 0 : index
    %59 = vector.load %arg9[%c0_40, %c1_41, %c0_42] : memref<2x18x128xbf16, #tpu.memory_space<vmem>>, vector<2x16x128xbf16>
    %60 = vector.shape_cast %59 : vector<2x16x128xbf16> to vector<32x128xbf16>
    %c0_43 = arith.constant 0 : index
    %c2_44 = arith.constant 2 : index
    %c0_45 = arith.constant 0 : index
    %61 = vector.load %arg9[%c0_43, %c2_44, %c0_45] : memref<2x18x128xbf16, #tpu.memory_space<vmem>>, vector<2x16x128xbf16>
    %62 = vector.shape_cast %61 : vector<2x16x128xbf16> to vector<32x128xbf16>
    %63 = tpu.concatenate %58, %60, %62 in 1 : vector<32x128xbf16>, vector<32x128xbf16>, vector<32x128xbf16> -> vector<32x384xbf16>
    %c0_46 = arith.constant 0 : index
    %c0_47 = arith.constant 0 : index
    %64 = vector.load %arg3[%c0_46, %c0_47] : memref<384x128xbf16, #tpu.memory_space<vmem>>, vector<384x128xbf16>
    %cst_48 = arith.constant dense<0.000000e+00> : vector<32x128xf32>
    %65 = tpu.matmul %63, %64, %cst_48 {dimension_numbers = #tpu.dot_dimension_numbers<[1], [0], [0], [1], [0, 0, 1, 1], [], []>} : vector<32x384xbf16>, vector<384x128xbf16>, vector<32x128xf32> -> vector<32x128xf32>
    %cst_49 = arith.constant dense<0.000000e+00> : vector<128xf32>
    %66 = vector.multi_reduction <add>, %65, %cst_49 [0] : vector<32x128xf32> to vector<128xf32>
    %67 = vector.shape_cast %66 : vector<128xf32> to vector<1x128xf32>
    %c8_i32_50 = arith.constant 8 : i32
    %68 = tpu.dynamic_rotate %67 by %c8_i32_50 dim 1 : vector<1x128xf32>, i32 -> vector<1x128xf32>
    %69 = arith.addf %67, %68 : vector<1x128xf32>
    %c16_i32_51 = arith.constant 16 : i32
    %70 = tpu.dynamic_rotate %69 by %c16_i32_51 dim 1 : vector<1x128xf32>, i32 -> vector<1x128xf32>
    %71 = arith.addf %69, %70 : vector<1x128xf32>
    %c32_i32_52 = arith.constant 32 : i32
    %72 = tpu.dynamic_rotate %71 by %c32_i32_52 dim 1 : vector<1x128xf32>, i32 -> vector<1x128xf32>
    %73 = arith.addf %71, %72 : vector<1x128xf32>
    %c64_i32_53 = arith.constant 64 : i32
    %74 = tpu.dynamic_rotate %73 by %c64_i32_53 dim 1 : vector<1x128xf32>, i32 -> vector<1x128xf32>
    %75 = arith.addf %73, %74 : vector<1x128xf32>
    %cst_54 = arith.constant 0.001953125 : f32
    %76 = vector.broadcast %cst_54 : f32 to vector<1x128xf32>
    %77 = arith.mulf %75, %76 : vector<1x128xf32>
    %78 = vector.broadcast %77 : vector<1x128xf32> to vector<32x128xf32>
    %79 = arith.subf %65, %78 : vector<32x128xf32>
    %80 = arith.mulf %79, %79 : vector<32x128xf32>
    %cst_55 = arith.constant dense<0.000000e+00> : vector<128xf32>
    %81 = vector.multi_reduction <add>, %80, %cst_55 [0] : vector<32x128xf32> to vector<128xf32>
    %82 = vector.shape_cast %81 : vector<128xf32> to vector<1x128xf32>
    %c8_i32_56 = arith.constant 8 : i32
    %83 = tpu.dynamic_rotate %82 by %c8_i32_56 dim 1 : vector<1x128xf32>, i32 -> vector<1x128xf32>
    %84 = arith.addf %82, %83 : vector<1x128xf32>
    %c16_i32_57 = arith.constant 16 : i32
    %85 = tpu.dynamic_rotate %84 by %c16_i32_57 dim 1 : vector<1x128xf32>, i32 -> vector<1x128xf32>
    %86 = arith.addf %84, %85 : vector<1x128xf32>
    %c32_i32_58 = arith.constant 32 : i32
    %87 = tpu.dynamic_rotate %86 by %c32_i32_58 dim 1 : vector<1x128xf32>, i32 -> vector<1x128xf32>
    %88 = arith.addf %86, %87 : vector<1x128xf32>
    %c64_i32_59 = arith.constant 64 : i32
    %89 = tpu.dynamic_rotate %88 by %c64_i32_59 dim 1 : vector<1x128xf32>, i32 -> vector<1x128xf32>
    %90 = arith.addf %88, %89 : vector<1x128xf32>
    %cst_60 = arith.constant 0.001953125 : f32
    %91 = vector.broadcast %cst_60 : f32 to vector<1x128xf32>
    %92 = arith.mulf %90, %91 : vector<1x128xf32>
    %c0_61 = arith.constant 0 : index
    %c0_62 = arith.constant 0 : index
    %93 = vector.load %arg6[%c0_61, %c0_62] : memref<1x128xf32, #tpu.memory_space<vmem>>, vector<1x128xf32>
    %cst_63 = arith.constant 9.99999974E-6 : f32
    %94 = vector.broadcast %cst_63 : f32 to vector<1x128xf32>
    %95 = arith.addf %92, %94 : vector<1x128xf32>
    %96 = math.rsqrt %95 : vector<1x128xf32>
    %97 = arith.mulf %93, %96 : vector<1x128xf32>
    %98 = vector.broadcast %97 : vector<1x128xf32> to vector<32x128xf32>
    %99 = arith.mulf %79, %98 : vector<32x128xf32>
    %c0_64 = arith.constant 0 : index
    %c0_65 = arith.constant 0 : index
    %100 = vector.load %arg7[%c0_64, %c0_65] : memref<1x128xf32, #tpu.memory_space<vmem>>, vector<1x128xf32>
    %101 = vector.broadcast %100 : vector<1x128xf32> to vector<32x128xf32>
    %102 = arith.addf %99, %101 : vector<32x128xf32>
    %c0_66 = arith.constant 0 : index
    %c0_67 = arith.constant 0 : index
    %c0_68 = arith.constant 0 : index
    %103 = vector.load %arg1[%c0_66, %c0_67, %c0_68] : memref<2x16x128xf32, #tpu.memory_space<vmem>>, vector<2x16x128xf32>
    %104 = vector.shape_cast %103 : vector<2x16x128xf32> to vector<32x128xf32>
    %105 = arith.addf %102, %104 : vector<32x128xf32>
    %cst_69 = arith.constant 0.000000e+00 : f32
    %106 = vector.broadcast %cst_69 : f32 to vector<32x128xf32>
    %107 = arith.maximumf %105, %106 : vector<32x128xf32>
    %108 = vector.shape_cast %107 : vector<32x128xf32> to vector<2x16x128xf32>
    %c0_70 = arith.constant 0 : index
    %c0_71 = arith.constant 0 : index
    %c0_72 = arith.constant 0 : index
    %109 = vector.load %arg8[%c0_70, %c0_71, %c0_72] : memref<2x16x128xf32, #tpu.memory_space<vmem>>, vector<2x16x128xf32>
    tpu.vector_store %arg8[%c0_70, %c0_71, %c0_72], %108 {strides = array<i32>} : memref<2x16x128xf32, #tpu.memory_space<vmem>>, vector<2x16x128xf32>,
    return
  }
  func.func @transform_0(%arg0: i32) -> (i32, i32, i32) {
    %c0_i32 = arith.constant 0 : i32
    %c0_i32_0 = arith.constant 0 : i32
    %c0_i32_1 = arith.constant 0 : i32
    %c0_i32_2 = arith.constant 0 : i32
    return %c0_i32, %c0_i32_0, %c0_i32_1 : i32, i32, i32
  }
  func.func @transform_1(%arg0: i32) -> (i32, i32) {
    %c0_i32 = arith.constant 0 : i32
    %c0_i32_0 = arith.constant 0 : i32
    %c0_i32_1 = arith.constant 0 : i32
    return %c0_i32, %c0_i32_0 : i32, i32
  }
  func.func @transform_2(%arg0: i32) -> (i32, i32) {
    %c0_i32 = arith.constant 0 : i32
    %c0_i32_0 = arith.constant 0 : i32
    %c0_i32_1 = arith.constant 0 : i32
    return %c0_i32, %c0_i32_0 : i32, i32
  }
  func.func @transform_3(%arg0: i32) -> (i32, i32) {
    %c0_i32 = arith.constant 0 : i32
    %c0_i32_0 = arith.constant 0 : i32
    %c0_i32_1 = arith.constant 0 : i32
    return %c0_i32, %c0_i32_0 : i32, i32
  }
  func.func @transform_4(%arg0: i32) -> (i32, i32) {
    %c0_i32 = arith.constant 0 : i32
    %c0_i32_0 = arith.constant 0 : i32
    %c0_i32_1 = arith.constant 0 : i32
    return %c0_i32, %c0_i32_0 : i32, i32
  }
  func.func @transform_5(%arg0: i32) -> (i32, i32) {
    %c0_i32 = arith.constant 0 : i32
    %c0_i32_0 = arith.constant 0 : i32
    %c0_i32_1 = arith.constant 0 : i32
    return %c0_i32, %c0_i32_0 : i32, i32
  }
  func.func @transform_6(%arg0: i32) -> (i32, i32) {
    %c0_i32 = arith.constant 0 : i32
    %c0_i32_0 = arith.constant 0 : i32
    %c0_i32_1 = arith.constant 0 : i32
    return %c0_i32, %c0_i32_0 : i32, i32
  }
  func.func @transform_7(%arg0: i32) -> (i32, i32, i32) {
    %c0_i32 = arith.constant 0 : i32
    %c0_i32_0 = arith.constant 0 : i32
    %c0_i32_1 = arith.constant 0 : i32
    %c0_i32_2 = arith.constant 0 : i32
    return %c0_i32, %c0_i32_0, %c0_i32_1 : i32, i32, i32
  }
}

</mosaic_0001>

<llo_original>
// kernel: tpu_custom_call.1
$region0: #{tpu_custom_call.1}
  #allocation0 [shape = 'u32[]', space=smem, size = 0x4, offset = 0x4, fixed_abs, tag = 'smem constant byte address 0x4 - core index']
  #allocation1 [shape = 'u32[144,128]{1,0:T(1,128)}', space=vmem, size = 0x12000, scoped, tag = 'internal scratch']
  #allocation2 [shape = 'bf16[2,18,128]{2,1,0:T(8,128)(2,1)}', space=vmem, size = 0x3000, scoped, tag = 'scratch operand']
  %s0 = inlined_call_operand.hbm [shape: f32[2,16,128], index: 0, kind: input, shape index: {}]
  %s1 = inlined_call_operand.hbm [shape: bf16[384,128], index: 1, kind: input, shape index: {}]
  %s2 = inlined_call_operand.hbm [shape: bf16[384,128], index: 2, kind: input, shape index: {}]
  %s3 = inlined_call_operand.vmem [shape: f32[1,128], index: 3, kind: input, shape index: {}]
  %s4 = inlined_call_operand.vmem [shape: f32[1,128], index: 4, kind: input, shape index: {}]
  %s5 = inlined_call_operand.vmem [shape: f32[1,128], index: 5, kind: input, shape index: {}]
  %s6 = inlined_call_operand.vmem [shape: f32[1,128], index: 6, kind: input, shape index: {}]
  %s7 = inlined_call_operand.hbm [shape: f32[2,16,128], index: 7, kind: output, shape index: {}]
  %s8 = sld [smem:[#allocation0]]
  $region50: #{tpu_custom_call.1} parent=0
    _
  %s10 = ssub.s32 1, %s8
  %s11 = scalar_select 0, %s10, %s8
  $region1: #{tpu_custom_call.1} parent=0
    #allocation3 [shape = 'u8[16384]{0}', space=vmem, size = 0x4000, scoped, tag = 'input window, operand 0, single buffered']
    #allocation4 [shape = 's32[1]{0}', space=sflag, size = 0x4, scoped, tag = 'scoped memory for tpu_custom_call.1']
    #allocation5 [shape = 's32[1]{0}', space=sflag, size = 0x4, scoped, tag = 'scoped memory for tpu_custom_call.1']
    #allocation6 [shape = 'u8[98304]{0}', space=vmem, size = 0x18000, scoped, tag = 'input window, operand 1, single buffered']
    #allocation7 [shape = 's32[1]{0}', space=sflag, size = 0x4, scoped, tag = 'scoped memory for tpu_custom_call.1']
    #allocation8 [shape = 'u8[98304]{0}', space=vmem, size = 0x18000, scoped, tag = 'input window, operand 2, single buffered']
    #allocation9 [shape = 'u8[16384]{0}', space=vmem, size = 0x4000, scoped, tag = 'output window, operand 0, single buffered']
    %12 = vsyncpa [#allocation4], 0
    %13 = vsyncpa [#allocation7], 0
    %14 = vsyncpa [#allocation5], 0
    // Predicated region
    $region2: #{tpu_custom_call.1} parent=1 // pred_check
      _
    $region3: #{tpu_custom_call.1} parent=1 // pred_check_branch
      %16 = sbr.rel (0) target = $region5
    $region4: #{tpu_custom_call.1} parent=1 // pred_region
      %s18 = ssub.s32 512, 512
      %19 = vsyncadd [#allocation4], %s18
      %s20 = sshll.u32 [#allocation3], 4
      %s21 = int_to_ptr.vmem [resolvable:$true] %s20
      %26 = dma.hbm_to_vmem [thread:$0]  %s0, 512, %s21, [#allocation4], 128, 128, 8
    $region5: #{tpu_custom_call.1} parent=1 // pred_fallthru
      _
    // Predicated region
    $region6: #{tpu_custom_call.1} parent=1 // pred_check
      _
    $region7: #{tpu_custom_call.1} parent=1 // pred_check_branch
      %28 = sbr.rel (0) target = $region9
    $region8: #{tpu_custom_call.1} parent=1 // pred_region
      %s30 = ssub.s32 3072, 3072
      %31 = vsyncadd [#allocation7], %s30
      %s32 = sshll.u32 [#allocation6], 4
      %s33 = int_to_ptr.vmem [resolvable:$true] %s32
      %38 = dma.hbm_to_vmem [thread:$0]  %s1, 3072, %s33, [#allocation7], 64, 64, 4
    $region9: #{tpu_custom_call.1} parent=1 // pred_fallthru
      _
    // Predicated region
    $region10: #{tpu_custom_call.1} parent=1 // pred_check
      _
    $region11: #{tpu_custom_call.1} parent=1 // pred_check_branch
      %40 = sbr.rel (0) target = $region13
    $region12: #{tpu_custom_call.1} parent=1 // pred_region
      %s42 = ssub.s32 3072, 3072
      %43 = vsyncadd [#allocation7], %s42
      %s44 = sshll.u32 [#allocation8], 4
      %s45 = int_to_ptr.vmem [resolvable:$true] %s44
      %50 = dma.hbm_to_vmem [thread:$0]  %s2, 3072, %s45, [#allocation7], 64, 64, 4
    $region13: #{tpu_custom_call.1} parent=1 // pred_fallthru
      _
    // Predicated region
    $region14: #{tpu_custom_call.1} parent=1 // pred_check
      _
    $region15: #{tpu_custom_call.1} parent=1 // pred_check_branch
      %52 = sbr.rel (0) target = $region17
    $region16: #{tpu_custom_call.1} parent=1 // pred_region
      _
    $region17: #{tpu_custom_call.1} parent=1 // pred_fallthru
      _
    // Predicated region
    $region18: #{tpu_custom_call.1} parent=1 // pred_check
      _
    $region19: #{tpu_custom_call.1} parent=1 // pred_check_branch
      %54 = sbr.rel (0) target = $region21
    $region20: #{tpu_custom_call.1} parent=1 // pred_region
      _
    $region21: #{tpu_custom_call.1} parent=1 // pred_fallthru
      _
    // Predicated region
    $region22: #{tpu_custom_call.1} parent=1 // pred_check
      _
    $region23: #{tpu_custom_call.1} parent=1 // pred_check_branch
      %56 = sbr.rel (0) target = $region25
    $region24: #{tpu_custom_call.1} parent=1 // pred_region
      _
    $region25: #{tpu_custom_call.1} parent=1 // pred_fallthru
      _
    // Predicated region
    $region26: #{tpu_custom_call.1} parent=1 // pred_check
      _
    $region27: #{tpu_custom_call.1} parent=1 // pred_check_branch
      %58 = sbr.rel (0) target = $region29
    $region28: #{tpu_custom_call.1} parent=1 // pred_region
      _
    $region29: #{tpu_custom_call.1} parent=1 // pred_fallthru
      _
    // Predicated region
    $region30: #{tpu_custom_call.1} parent=1 // pred_check
      _
    $region31: #{tpu_custom_call.1} parent=1 // pred_check_branch
      %60 = sbr.rel (0) target = $region33
    $region32: #{tpu_custom_call.1} parent=1 // pred_region
      %61 = dma.done [#allocation4], 512
    $region33: #{tpu_custom_call.1} parent=1 // pred_fallthru
      _
    // Predicated region
    $region34: #{tpu_custom_call.1} parent=1 // pred_check
      _
    $region35: #{tpu_custom_call.1} parent=1 // pred_check_branch
      %63 = sbr.rel (0) target = $region37
    $region36: #{tpu_custom_call.1} parent=1 // pred_region
      %64 = dma.done [#allocation7], 3072
    $region37: #{tpu_custom_call.1} parent=1 // pred_fallthru
      _
    // Predicated region
    $region38: #{tpu_custom_call.1} parent=1 // pred_check
      _
    $region39: #{tpu_custom_call.1} parent=1 // pred_check_branch
      %66 = sbr.rel (0) target = $region41
    $region40: #{tpu_custom_call.1} parent=1 // pred_region
      %67 = dma.done [#allocation7], 3072
    $region41: #{tpu_custom_call.1} parent=1 // pred_fallthru
      _
    %vm69 = vcmask 1040384
    %vm70 = vsmask.f32 256
    %vm71 = vmand %vm69, %vm70
    %v72 = vld [vmem:[#allocation2] sm:$0x1]
    %v73 = vsel %vm71, 0, %v72
    %74 = vst [vmem:[#allocation2] sm:$0x1] %v73
    %v75 = vld [vmem:[#allocation2 + $0xc] sm:$0x1]
    %v76 = vsel %vm71, 0, %v75
    %77 = vst [vmem:[#allocation2 + $0xc] sm:$0x1] %v76
    %vm78 = vsmask.f32 7938
    %vm79 = vmand %vm69, %vm78
    %v80 = vld [vmem:[#allocation2 + $0x8] sm:$0x1]
    %v81 = vsel %vm79, 0, %v80
    %82 = vst [vmem:[#allocation2 + $0x8] sm:$0x1] %v81
    %v83 = vld [vmem:[#allocation2 + $0x14] sm:$0x1]
    %v84 = vsel %vm79, 0, %v83
    %85 = vst [vmem:[#allocation2 + $0x14] sm:$0x1] %v84
    %v86 = vld [vmem:[#allocation3] sm:$0xff]
    %v87 = vld [vmem:[#allocation3 + $0x8] sm:$0xff]
    %v88 = vld [vmem:[#allocation3 + $0x10] sm:$0xff]
    %v89 = vld [vmem:[#allocation3 + $0x18] sm:$0xff]
    %v90 = vpack.c.bf16 %v87, %v86
    %v91 = vpack.c.bf16 %v89, %v88
    %v94 = vunpack.c.l.b16 %v90
    %v95 = vunpack.c.h.b16 %v90
    %v96 = vunpack.c.l.b16 %v91
    %v97 = vunpack.c.h.b16 %v91
    %v98 = vpack.c.b16 %v94, %v94
    %v99 = vpack.c.b16 %v95, %v95
    %v100 = vpack.c.b16 %v96, %v96
    %v101 = vpack.c.b16 %v97, %v97
    %vm102 = vsmask.f32 4368
    %vm103 = vmor %vm70, %vm102
    %v105 = vshrl.u32 %v98, 16
    %v107 = vrot.slane %v105, 7
    %v108 = vshll.u32 %v98, 16
    %v110 = vor.u32 %v107, %v108
    %v111 = vrot.slane %v107, 4
    %v113 = vshrl.u32 %v99, 16
    %v115 = vrot.slane %v113, 7
    %v116 = vshll.u32 %v99, 16
    %v118 = vor.u32 %v115, %v116
    %v119 = vsel %vm103, %v111, %v118
    %v120 = vrot.slane %v115, 4
    %v122 = vshrl.u32 %v100, 16
    %v124 = vrot.slane %v122, 7
    %v125 = vshll.u32 %v100, 16
    %v127 = vor.u32 %v124, %v125
    %v128 = vrot.slane %v124, 4
    %v130 = vshrl.u32 %v101, 16
    %v132 = vrot.slane %v130, 7
    %v133 = vshll.u32 %v101, 16
    %v135 = vor.u32 %v132, %v133
    %v136 = vsel %vm103, %v128, %v135
    %v137 = vrot.slane %v132, 4
    %vm144 = vcmask 1043456
    %vm145 = vmand %vm144, %vm78
    %v146 = vld [vmem:[#allocation2] sm:$0xf]
    %v147 = vsel %vm145, %v110, %v146
    %148 = vst [vmem:[#allocation2] sm:$0xf] %v147
    %149 = vst [vmem:[#allocation2 + $0x4] sm:$0xf] %v119
    %v150 = vld [vmem:[#allocation2 + $0x8] sm:$0x1]
    %v151 = vsel %vm71, %v120, %v150
    %152 = vst [vmem:[#allocation2 + $0x8] sm:$0x1] %v151
    %v153 = vld [vmem:[#allocation2 + $0xc] sm:$0xf]
    %v154 = vsel %vm145, %v127, %v153
    %155 = vst [vmem:[#allocation2 + $0xc] sm:$0xf] %v154
    %156 = vst [vmem:[#allocation2 + $0x10] sm:$0xf] %v136
    %v157 = vld [vmem:[#allocation2 + $0x14] sm:$0x1]
    %v158 = vsel %vm71, %v137, %v157
    %159 = vst [vmem:[#allocation2 + $0x14] sm:$0x1] %v158
    %v160 = vld [vmem:[#allocation2] sm:$0xf]
    %v161 = vld [vmem:[#allocation2 + $0x4] sm:$0xf]
    %v162 = vld [vmem:[#allocation2 + $0xc] sm:$0xf]
    %v163 = vld [vmem:[#allocation2 + $0x10] sm:$0xf]
    %v164 = vld [vmem:[#allocation2 + $0x8] sm:$0x1]
    %v165 = vld [vmem:[#allocation2 + $0x14] sm:$0x1]
    %vm166 = vsmask.f32 3328
    %vm167 = vsmask.f32 7440
    %vm168 = vmor %vm166, %vm167
    %v170 = vshrl.u32 %v160, 16
    %v172 = vrot.slane %v170, 4
    %v173 = vshll.u32 %v160, 16
    %v175 = vrot.slane %v173, 5
    %v176 = vor.u32 %v172, %v175
    %v177 = vrot.slane %v176, 4
    %v179 = vshll.u32 %v161, 16
    %v181 = vrot.slane %v179, 5
    %v182 = vsel %vm168, %v177, %v181
    %v183 = vshrl.u32 %v161, 16
    %v185 = vrot.slane %v183, 4
    %v186 = vor.u32 %v185, %v181
    %v187 = vrot.slane %v186, 4
    %v189 = vshll.u32 %v164, 16
    %v191 = vrot.slane %v189, 5
    %v192 = vsel %vm168, %v187, %v191
    %v194 = vshrl.u32 %v162, 16
    %v196 = vrot.slane %v194, 4
    %v197 = vshll.u32 %v162, 16
    %v199 = vrot.slane %v197, 5
    %v200 = vor.u32 %v196, %v199
    %v201 = vrot.slane %v200, 4
    %v203 = vshll.u32 %v163, 16
    %v205 = vrot.slane %v203, 5
    %v206 = vsel %vm168, %v201, %v205
    %v207 = vshrl.u32 %v163, 16
    %v209 = vrot.slane %v207, 4
    %v210 = vor.u32 %v209, %v205
    %v211 = vrot.slane %v210, 4
    %v213 = vshll.u32 %v165, 16
    %v215 = vrot.slane %v213, 5
    %v216 = vsel %vm168, %v211, %v215
    %v217 = vld [vmem:[#allocation2] sm:$0xe]
    %v218 = vld [vmem:[#allocation2 + $0xc] sm:$0xe]
    %vm225 = vcmask 1042432
    %vm226 = vcmask 1046532
    %vm227 = vmor %vm225, %vm226
    %v228 = vrot.slane %v217, 5
    %v229 = vrot.slane %v228, 4
    %v230 = vrot.slane %v161, 5
    %v231 = vsel %vm227, %v229, %v230
    %v232 = vrot.slane %v230, 4
    %v233 = vrot.slane %v164, 5
    %v234 = vsel %vm227, %v232, %v233
    %v235 = vrot.slane %v218, 5
    %v236 = vrot.slane %v235, 4
    %v237 = vrot.slane %v163, 5
    %v238 = vsel %vm227, %v236, %v237
    %v239 = vrot.slane %v237, 4
    %v240 = vrot.slane %v165, 5
    %v241 = vsel %vm227, %v239, %v240
    %v244 = vunpack.c.l.b16 %v160
    %v245 = vunpack.c.l.b16 %v161
    %v246 = vunpack.c.l.b16 %v162
    %v247 = vunpack.c.l.b16 %v163
    %v248 = vpack.c.b16 %v245, %v244
    %v249 = vpack.c.b16 %v247, %v246
    %v252 = vunpack.c.l.b16 %v182
    %v253 = vunpack.c.l.b16 %v192
    %v254 = vunpack.c.l.b16 %v206
    %v255 = vunpack.c.l.b16 %v216
    %v256 = vpack.c.b16 %v253, %v252
    %v257 = vpack.c.b16 %v255, %v254
    %v260 = vunpack.c.l.b16 %v231
    %v261 = vunpack.c.l.b16 %v234
    %v262 = vunpack.c.l.b16 %v238
    %v263 = vunpack.c.l.b16 %v241
    %v264 = vpack.c.b16 %v261, %v260
    %v265 = vpack.c.b16 %v263, %v262
    %v268 = vld [vmem:[#allocation6] sm:$0xf]
    %v269 = vld [vmem:[#allocation6 + $0x4] sm:$0xf]
    %v270 = vld [vmem:[#allocation6 + $0x8] sm:$0xf]
    %v271 = vld [vmem:[#allocation6 + $0xc] sm:$0xf]
    %v272 = vld [vmem:[#allocation6 + $0x10] sm:$0xf]
    %v273 = vld [vmem:[#allocation6 + $0x14] sm:$0xf]
    %v274 = vld [vmem:[#allocation6 + $0x18] sm:$0xf]
    %v275 = vld [vmem:[#allocation6 + $0x1c] sm:$0xf]
    %v276 = vld [vmem:[#allocation6 + $0x20] sm:$0xf]
    %v277 = vld [vmem:[#allocation6 + $0x24] sm:$0xf]
    %v278 = vld [vmem:[#allocation6 + $0x28] sm:$0xf]
    %v279 = vld [vmem:[#allocation6 + $0x2c] sm:$0xf]
    %v280 = vld [vmem:[#allocation6 + $0x30] sm:$0xf]
    %v281 = vld [vmem:[#allocation6 + $0x34] sm:$0xf]
    %v282 = vld [vmem:[#allocation6 + $0x38] sm:$0xf]
    %v283 = vld [vmem:[#allocation6 + $0x3c] sm:$0xf]
    %v284 = vld [vmem:[#allocation6 + $0x40] sm:$0xf]
    %v285 = vld [vmem:[#allocation6 + $0x44] sm:$0xf]
    %v286 = vld [vmem:[#allocation6 + $0x48] sm:$0xf]
    %v287 = vld [vmem:[#allocation6 + $0x4c] sm:$0xf]
    %v288 = vld [vmem:[#allocation6 + $0x50] sm:$0xf]
    %v289 = vld [vmem:[#allocation6 + $0x54] sm:$0xf]
    %v290 = vld [vmem:[#allocation6 + $0x58] sm:$0xf]
    %v291 = vld [vmem:[#allocation6 + $0x5c] sm:$0xf]
    %v292 = vld [vmem:[#allocation6 + $0x60] sm:$0xf]
    %v293 = vld [vmem:[#allocation6 + $0x64] sm:$0xf]
    %v294 = vld [vmem:[#allocation6 + $0x68] sm:$0xf]
    %v295 = vld [vmem:[#allocation6 + $0x6c] sm:$0xf]
    %v296 = vld [vmem:[#allocation6 + $0x70] sm:$0xf]
    %v297 = vld [vmem:[#allocation6 + $0x74] sm:$0xf]
    %v298 = vld [vmem:[#allocation6 + $0x78] sm:$0xf]
    %v299 = vld [vmem:[#allocation6 + $0x7c] sm:$0xf]
    %v300 = vld [vmem:[#allocation6 + $0x80] sm:$0xf]
    %v301 = vld [vmem:[#allocation6 + $0x84] sm:$0xf]
    %v302 = vld [vmem:[#allocation6 + $0x88] sm:$0xf]
    %v303 = vld [vmem:[#allocation6 + $0x8c] sm:$0xf]
    %v304 = vld [vmem:[#allocation6 + $0x90] sm:$0xf]
    %v305 = vld [vmem:[#allocation6 + $0x94] sm:$0xf]
    %v306 = vld [vmem:[#allocation6 + $0x98] sm:$0xf]
    %v307 = vld [vmem:[#allocation6 + $0x9c] sm:$0xf]
    %v308 = vld [vmem:[#allocation6 + $0xa0] sm:$0xf]
    %v309 = vld [vmem:[#allocation6 + $0xa4] sm:$0xf]
    %v310 = vld [vmem:[#allocation6 + $0xa8] sm:$0xf]
    %v311 = vld [vmem:[#allocation6 + $0xac] sm:$0xf]
    %v312 = vld [vmem:[#allocation6 + $0xb0] sm:$0xf]
    %v313 = vld [vmem:[#allocation6 + $0xb4] sm:$0xf]
    %v314 = vld [vmem:[#allocation6 + $0xb8] sm:$0xf]
    %v315 = vld [vmem:[#allocation6 + $0xbc] sm:$0xf]
    %v364 = vunpack.c.l.b16 %v268
    %v365 = vunpack.c.l.b16 %v269
    %v366 = vunpack.c.l.b16 %v270
    %v367 = vunpack.c.l.b16 %v271
    %v368 = vunpack.c.l.b16 %v272
    %v369 = vunpack.c.l.b16 %v273
    %v370 = vunpack.c.l.b16 %v274
    %v371 = vunpack.c.l.b16 %v275
    %v372 = vunpack.c.l.b16 %v276
    %v373 = vunpack.c.l.b16 %v277
    %v374 = vunpack.c.l.b16 %v278
    %v375 = vunpack.c.l.b16 %v279
    %v376 = vunpack.c.l.b16 %v280
    %v377 = vunpack.c.l.b16 %v281
    %v378 = vunpack.c.l.b16 %v282
    %v379 = vunpack.c.l.b16 %v283
    %v380 = vunpack.c.l.b16 %v284
    %v381 = vunpack.c.l.b16 %v285
    %v382 = vunpack.c.l.b16 %v286
    %v383 = vunpack.c.l.b16 %v287
    %v384 = vunpack.c.l.b16 %v288
    %v385 = vunpack.c.l.b16 %v289
    %v386 = vunpack.c.l.b16 %v290
    %v387 = vunpack.c.l.b16 %v291
    %v388 = vunpack.c.l.b16 %v292
    %v389 = vunpack.c.l.b16 %v293
    %v390 = vunpack.c.l.b16 %v294
    %v391 = vunpack.c.l.b16 %v295
    %v392 = vunpack.c.l.b16 %v296
    %v393 = vunpack.c.l.b16 %v297
    %v394 = vunpack.c.l.b16 %v298
    %v395 = vunpack.c.l.b16 %v299
    %v396 = vunpack.c.l.b16 %v300
    %v397 = vunpack.c.l.b16 %v301
    %v398 = vunpack.c.l.b16 %v302
    %v399 = vunpack.c.l.b16 %v303
    %v400 = vunpack.c.l.b16 %v304
    %v401 = vunpack.c.l.b16 %v305
    %v402 = vunpack.c.l.b16 %v306
    %v403 = vunpack.c.l.b16 %v307
    %v404 = vunpack.c.l.b16 %v308
    %v405 = vunpack.c.l.b16 %v309
    %v406 = vunpack.c.l.b16 %v310
    %v407 = vunpack.c.l.b16 %v311
    %v408 = vunpack.c.l.b16 %v312
    %v409 = vunpack.c.l.b16 %v313
    %v410 = vunpack.c.l.b16 %v314
    %v411 = vunpack.c.l.b16 %v315
    %v412 = vpack.c.b16 %v365, %v364
    %v413 = vpack.c.b16 %v367, %v366
    %v414 = vpack.c.b16 %v369, %v368
    %v415 = vpack.c.b16 %v371, %v370
    %v416 = vpack.c.b16 %v373, %v372
    %v417 = vpack.c.b16 %v375, %v374
    %v418 = vpack.c.b16 %v377, %v376
    %v419 = vpack.c.b16 %v379, %v378
    %v420 = vpack.c.b16 %v381, %v380
    %v421 = vpack.c.b16 %v383, %v382
    %v422 = vpack.c.b16 %v385, %v384
    %v423 = vpack.c.b16 %v387, %v386
    %v424 = vpack.c.b16 %v389, %v388
    %v425 = vpack.c.b16 %v391, %v390
    %v426 = vpack.c.b16 %v393, %v392
    %v427 = vpack.c.b16 %v395, %v394
    %v428 = vpack.c.b16 %v397, %v396
    %v429 = vpack.c.b16 %v399, %v398
    %v430 = vpack.c.b16 %v401, %v400
    %v431 = vpack.c.b16 %v403, %v402
    %v432 = vpack.c.b16 %v405, %v404
    %v433 = vpack.c.b16 %v407, %v406
    %v434 = vpack.c.b16 %v409, %v408
    %v435 = vpack.c.b16 %v411, %v410
    %460 = vmatprep.subr.bf16.mxu0 0
    %461 = vmatpush1.bf16.msra.mxu0 %v419
    %462 = vmatprep.subr.bf16.mxu0 0
    %463 = vmatpush1.bf16.msra.mxu0 %v418
    %464 = vmatprep.subr.bf16.mxu0 0
    %465 = vmatpush1.bf16.msra.mxu0 %v417
    %466 = vmatprep.subr.bf16.mxu0 0
    %467 = vmatpush1.bf16.msra.mxu0 %v416
    %468 = vmatprep.subr.bf16.mxu0 0
    %469 = vmatpush1.bf16.msra.mxu0 %v415
    %470 = vmatprep.subr.bf16.mxu0 0
    %471 = vmatpush1.bf16.msra.mxu0 %v414
    %472 = vmatprep.subr.bf16.mxu0 0
    %473 = vmatpush1.bf16.msra.mxu0 %v413
    %474 = vmatprep.subr.bf16.mxu0 0
    %475 = vmatpush1.bf16.msra.mxu0 %v412
    %476 = vmatprep.subr.bf16.mxu0 0
    %477 = vmatpush2.bf16.msra.mxu0 %v427
    %478 = vmatprep.subr.bf16.mxu0 0
    %479 = vmatpush2.bf16.msra.mxu0 %v426
    %480 = vmatprep.subr.bf16.mxu0 0
    %481 = vmatpush2.bf16.msra.mxu0 %v425
    %482 = vmatprep.subr.bf16.mxu0 0
    %483 = vmatpush2.bf16.msra.mxu0 %v424
    %484 = vmatprep.subr.bf16.mxu0 0
    %485 = vmatpush2.bf16.msra.mxu0 %v423
    %486 = vmatprep.subr.bf16.mxu0 0
    %487 = vmatpush2.bf16.msra.mxu0 %v422
    %488 = vmatprep.subr.bf16.mxu0 0
    %489 = vmatpush2.bf16.msra.mxu0 %v421
    %490 = vmatprep.subr.bf16.mxu0 0
    %491 = vmatpush2.bf16.msra.mxu0 %v420
    %492 = vmatprep.mubr.bf16.mxu0 %v256
    %493 = vmatmul.mubr.bf16.gmra.mxu0 %v248
    %v494 = vpop.f32.mrf.mxu0
    %v495 = vadd.f32 0.0, %v494
    %v496 = vpop.f32.mrf.mxu0
    %v497 = vpop.f32.mrf.mxu0
    %v498 = vadd.f32 0.0, %v497
    %v499 = vpop.f32.mrf.mxu0
    %500 = vmatprep.mubr.bf16.mxu0 %v257
    %501 = vmatmul.mubr.bf16.gmra.mxu0 %v249
    %v502 = vpop.f32.mrf.mxu0
    %v503 = vadd.f32 0.0, %v502
    %v504 = vpop.f32.mrf.mxu0
    %v505 = vpop.f32.mrf.mxu0
    %v506 = vadd.f32 0.0, %v505
    %v507 = vpop.f32.mrf.mxu0
    %508 = vdwg.mxu0
    %509 = vmatprep.subr.bf16.mxu0 0
    %510 = vmatpush1.bf16.msra.mxu0 %v435
    %511 = vmatprep.subr.bf16.mxu0 0
    %512 = vmatpush1.bf16.msra.mxu0 %v434
    %513 = vmatprep.subr.bf16.mxu0 0
    %514 = vmatpush1.bf16.msra.mxu0 %v433
    %515 = vmatprep.subr.bf16.mxu0 0
    %516 = vmatpush1.bf16.msra.mxu0 %v432
    %517 = vmatprep.subr.bf16.mxu0 0
    %518 = vmatpush1.bf16.msra.mxu0 %v431
    %519 = vmatprep.subr.bf16.mxu0 0
    %520 = vmatpush1.bf16.msra.mxu0 %v430
    %521 = vmatprep.subr.bf16.mxu0 0
    %522 = vmatpush1.bf16.msra.mxu0 %v429
    %523 = vmatprep.subr.bf16.mxu0 0
    %524 = vmatpush1.bf16.msra.mxu0 %v428
    %525 = vmatprep.subr.bf16.mxu0 0
    %526 = vmatpush2.bf16.msra.mxu0 0
    %527 = vmatprep.subr.bf16.mxu0 0
    %528 = vmatpush2.bf16.msra.mxu0 0
    %529 = vmatprep.subr.bf16.mxu0 0
    %530 = vmatpush2.bf16.msra.mxu0 0
    %531 = vmatprep.subr.bf16.mxu0 0
    %532 = vmatpush2.bf16.msra.mxu0 0
    %533 = vmatprep.subr.bf16.mxu0 0
    %534 = vmatpush2.bf16.msra.mxu0 0
    %535 = vmatprep.subr.bf16.mxu0 0
    %536 = vmatpush2.bf16.msra.mxu0 0
    %537 = vmatprep.subr.bf16.mxu0 0
    %538 = vmatpush2.bf16.msra.mxu0 0
    %539 = vmatprep.subr.bf16.mxu0 0
    %540 = vmatpush2.bf16.msra.mxu0 0
    %541 = vmatprep.mubr.bf16.mxu0 0
    %542 = vmatmul.mubr.bf16.gmra.mxu0 %v264
    %v543 = vpop.f32.mrf.mxu0
    %v544 = vadd.f32 %v495, %v543
    %v545 = vpop.f32.mrf.mxu0
    %v546 = vpop.f32.mrf.mxu0
    %v547 = vadd.f32 %v498, %v546
    %v548 = vpop.f32.mrf.mxu0
    %549 = vmatprep.mubr.bf16.mxu0 0
    %550 = vmatmul.mubr.bf16.gmra.mxu0 %v265
    %v551 = vpop.f32.mrf.mxu0
    %v552 = vadd.f32 %v503, %v551
    %v553 = vpop.f32.mrf.mxu0
    %v554 = vpop.f32.mrf.mxu0
    %v555 = vadd.f32 %v506, %v554
    %v556 = vpop.f32.mrf.mxu0
    %557 = vdwg.mxu0
    %v558 = vadd.f32 %v544, %v547
    %v559 = vadd.f32 %v558, %v552
    %v560 = vadd.f32 %v559, %v555
    %v561 = vrot.slane %v560, 4
    %v562 = vadd.f32 %v560, %v561
    %v563 = vrot.slane %v562, 2
    %v564 = vadd.f32 %v562, %v563
    %v565 = vrot.slane %v564, 1
    %v566 = vadd.f32 %v564, %v565
    %567 = vrot.lane.b32.xlu0 %v566, 8
    %v568 = vpop.permute.xlu0 %567
    %v569 = vadd.f32 %v566, %v568
    %570 = vrot.lane.b32.xlu0 %v569, 16
    %v571 = vpop.permute.xlu0 %570
    %v572 = vadd.f32 %v569, %v571
    %573 = vrot.lane.b32.xlu0 %v572, 32
    %v574 = vpop.permute.xlu0 %573
    %v575 = vadd.f32 %v572, %v574
    %576 = vrot.lane.b32.xlu0 %v575, 64
    %v577 = vpop.permute.xlu0 %576
    %v578 = vadd.f32 %v575, %v577
    %v579 = vmul.f32 %v578, 0.001953125
    %v580 = vlaneseq
    %v581 = vshrl.u32 %v580, 7
    %v582 = vsub.s32 0, %v581
    %v583 = vrot.slane %v579, %v582
    %v584 = vsub.f32 %v544, %v583
    %v585 = vsub.f32 %v547, %v583
    %v586 = vsub.f32 %v552, %v583
    %v587 = vsub.f32 %v555, %v583
    %v588 = vmul.f32 %v584, %v584
    %v589 = vmul.f32 %v585, %v585
    %v590 = vmul.f32 %v586, %v586
    %v591 = vmul.f32 %v587, %v587
    %v592 = vadd.f32 %v588, %v589
    %v593 = vadd.f32 %v592, %v590
    %v594 = vadd.f32 %v593, %v591
    %v595 = vrot.slane %v594, 4
    %v596 = vadd.f32 %v594, %v595
    %v597 = vrot.slane %v596, 2
    %v598 = vadd.f32 %v596, %v597
    %v599 = vrot.slane %v598, 1
    %v600 = vadd.f32 %v598, %v599
    %601 = vrot.lane.b32.xlu0 %v600, 8
    %v602 = vpop.permute.xlu0 %601
    %v603 = vadd.f32 %v600, %v602
    %604 = vrot.lane.b32.xlu0 %v603, 16
    %v605 = vpop.permute.xlu0 %604
    %v606 = vadd.f32 %v603, %v605
    %607 = vrot.lane.b32.xlu0 %v606, 32
    %v608 = vpop.permute.xlu0 %607
    %v609 = vadd.f32 %v606, %v608
    %610 = vrot.lane.b32.xlu0 %v609, 64
    %v611 = vpop.permute.xlu0 %610
    %v612 = vadd.f32 %v609, %v611
    %v613 = vmul.f32 %v612, 0.001953125
    %v614 = vld [vmem:[%s3] sm:$0x1]
    %v615 = vadd.f32 %v613, 1e-05
    %v616 = vrsqrt.pop %v615
    %v617 = vmul.f32 %v614, %v616
    %v619 = vlaneseq
    %v620 = vshrl.u32 %v619, 7
    %v621 = vsub.s32 0, %v620
    %v622 = vrot.slane %v617, %v621
    %v624 = vmul.f32 %v584, %v622
    %v625 = vmul.f32 %v585, %v622
    %v626 = vmul.f32 %v586, %v622
    %v627 = vmul.f32 %v587, %v622
    %v628 = vld [vmem:[%s4] sm:$0x1]
    %v630 = vlaneseq
    %v631 = vshrl.u32 %v630, 7
    %v632 = vsub.s32 0, %v631
    %v633 = vrot.slane %v628, %v632
    %v635 = vadd.f32 %v624, %v633
    %v636 = vadd.f32 %v625, %v633
    %v637 = vadd.f32 %v626, %v633
    %v638 = vadd.f32 %v627, %v633
    %v639 = vmax.f32 %v635, 0.0
    %v640 = vmax.f32 %v636, 0.0
    %v641 = vmax.f32 %v637, 0.0
    %v642 = vmax.f32 %v638, 0.0
    %v643 = vpack.c.bf16 %v640, %v639
    %v644 = vpack.c.bf16 %v642, %v641
    %v647 = vunpack.c.l.b16 %v643
    %v648 = vunpack.c.h.b16 %v643
    %v649 = vunpack.c.l.b16 %v644
    %v650 = vunpack.c.h.b16 %v644
    %v651 = vpack.c.b16 %v647, %v647
    %v652 = vpack.c.b16 %v648, %v648
    %v653 = vpack.c.b16 %v649, %v649
    %v654 = vpack.c.b16 %v650, %v650
    %v656 = vshrl.u32 %v651, 16
    %v658 = vrot.slane %v656, 7
    %v659 = vshll.u32 %v651, 16
    %v661 = vor.u32 %v658, %v659
    %v662 = vrot.slane %v658, 4
    %v664 = vshrl.u32 %v652, 16
    %v666 = vrot.slane %v664, 7
    %v667 = vshll.u32 %v652, 16
    %v669 = vor.u32 %v666, %v667
    %v670 = vsel %vm103, %v662, %v669
    %v671 = vrot.slane %v666, 4
    %v673 = vshrl.u32 %v653, 16
    %v675 = vrot.slane %v673, 7
    %v676 = vshll.u32 %v653, 16
    %v678 = vor.u32 %v675, %v676
    %v679 = vrot.slane %v675, 4
    %v681 = vshrl.u32 %v654, 16
    %v683 = vrot.slane %v681, 7
    %v684 = vshll.u32 %v654, 16
    %v686 = vor.u32 %v683, %v684
    %v687 = vsel %vm103, %v679, %v686
    %v688 = vrot.slane %v683, 4
    %v695 = vsel %vm145, %v661, %v160
    %696 = vst [vmem:[#allocation2] sm:$0xf] %v695
    %697 = vst [vmem:[#allocation2 + $0x4] sm:$0xf] %v670
    %v698 = vld [vmem:[#allocation2 + $0x8] sm:$0x1]
    %v699 = vsel %vm71, %v671, %v698
    %700 = vst [vmem:[#allocation2 + $0x8] sm:$0x1] %v699
    %v701 = vld [vmem:[#allocation2 + $0xc] sm:$0xf]
    %v702 = vsel %vm145, %v678, %v701
    %703 = vst [vmem:[#allocation2 + $0xc] sm:$0xf] %v702
    %704 = vst [vmem:[#allocation2 + $0x10] sm:$0xf] %v687
    %v705 = vld [vmem:[#allocation2 + $0x14] sm:$0x1]
    %v706 = vsel %vm71, %v688, %v705
    %707 = vst [vmem:[#allocation2 + $0x14] sm:$0x1] %v706
    %v708 = vld [vmem:[#allocation2] sm:$0xf]
    %v709 = vld [vmem:[#allocation2 + $0x4] sm:$0xf]
    %v710 = vld [vmem:[#allocation2 + $0xc] sm:$0xf]
    %v711 = vld [vmem:[#allocation2 + $0x10] sm:$0xf]
    %v712 = vld [vmem:[#allocation2 + $0x8] sm:$0x1]
    %v713 = vld [vmem:[#allocation2 + $0x14] sm:$0x1]
    %v715 = vshrl.u32 %v708, 16
    %v717 = vrot.slane %v715, 4
    %v718 = vshll.u32 %v708, 16
    %v720 = vrot.slane %v718, 5
    %v721 = vor.u32 %v717, %v720
    %v722 = vrot.slane %v721, 4
    %v724 = vshll.u32 %v709, 16
    %v726 = vrot.slane %v724, 5
    %v727 = vsel %vm168, %v722, %v726
    %v728 = vshrl.u32 %v709, 16
    %v730 = vrot.slane %v728, 4
    %v731 = vor.u32 %v730, %v726
    %v732 = vrot.slane %v731, 4
    %v734 = vshll.u32 %v712, 16
    %v736 = vrot.slane %v734, 5
    %v737 = vsel %vm168, %v732, %v736
    %v739 = vshrl.u32 %v710, 16
    %v741 = vrot.slane %v739, 4
    %v742 = vshll.u32 %v710, 16
    %v744 = vrot.slane %v742, 5
    %v745 = vor.u32 %v741, %v744
    %v746 = vrot.slane %v745, 4
    %v748 = vshll.u32 %v711, 16
    %v750 = vrot.slane %v748, 5
    %v751 = vsel %vm168, %v746, %v750
    %v752 = vshrl.u32 %v711, 16
    %v754 = vrot.slane %v752, 4
    %v755 = vor.u32 %v754, %v750
    %v756 = vrot.slane %v755, 4
    %v758 = vshll.u32 %v713, 16
    %v760 = vrot.slane %v758, 5
    %v761 = vsel %vm168, %v756, %v760
    %v762 = vld [vmem:[#allocation2] sm:$0xe]
    %v763 = vld [vmem:[#allocation2 + $0xc] sm:$0xe]
    %v770 = vrot.slane %v762, 5
    %v771 = vrot.slane %v770, 4
    %v772 = vrot.slane %v709, 5
    %v773 = vsel %vm227, %v771, %v772
    %v774 = vrot.slane %v772, 4
    %v775 = vrot.slane %v712, 5
    %v776 = vsel %vm227, %v774, %v775
    %v777 = vrot.slane %v763, 5
    %v778 = vrot.slane %v777, 4
    %v779 = vrot.slane %v711, 5
    %v780 = vsel %vm227, %v778, %v779
    %v781 = vrot.slane %v779, 4
    %v782 = vrot.slane %v713, 5
    %v783 = vsel %vm227, %v781, %v782
    %v786 = vunpack.c.l.b16 %v708
    %v787 = vunpack.c.l.b16 %v709
    %v788 = vunpack.c.l.b16 %v710
    %v789 = vunpack.c.l.b16 %v711
    %v790 = vpack.c.b16 %v787, %v786
    %v791 = vpack.c.b16 %v789, %v788
    %v794 = vunpack.c.l.b16 %v727
    %v795 = vunpack.c.l.b16 %v737
    %v796 = vunpack.c.l.b16 %v751
    %v797 = vunpack.c.l.b16 %v761
    %v798 = vpack.c.b16 %v795, %v794
    %v799 = vpack.c.b16 %v797, %v796
    %v802 = vunpack.c.l.b16 %v773
    %v803 = vunpack.c.l.b16 %v776
    %v804 = vunpack.c.l.b16 %v780
    %v805 = vunpack.c.l.b16 %v783
    %v806 = vpack.c.b16 %v803, %v802
    %v807 = vpack.c.b16 %v805, %v804
    %v810 = vld [vmem:[#allocation8] sm:$0xf]
    %v811 = vld [vmem:[#allocation8 + $0x4] sm:$0xf]
    %v812 = vld [vmem:[#allocation8 + $0x8] sm:$0xf]
    %v813 = vld [vmem:[#allocation8 + $0xc] sm:$0xf]
    %v814 = vld [vmem:[#allocation8 + $0x10] sm:$0xf]
    %v815 = vld [vmem:[#allocation8 + $0x14] sm:$0xf]
    %v816 = vld [vmem:[#allocation8 + $0x18] sm:$0xf]
    %v817 = vld [vmem:[#allocation8 + $0x1c] sm:$0xf]
    %v818 = vld [vmem:[#allocation8 + $0x20] sm:$0xf]
    %v819 = vld [vmem:[#allocation8 + $0x24] sm:$0xf]
    %v820 = vld [vmem:[#allocation8 + $0x28] sm:$0xf]
    %v821 = vld [vmem:[#allocation8 + $0x2c] sm:$0xf]
    %v822 = vld [vmem:[#allocation8 + $0x30] sm:$0xf]
    %v823 = vld [vmem:[#allocation8 + $0x34] sm:$0xf]
    %v824 = vld [vmem:[#allocation8 + $0x38] sm:$0xf]
    %v825 = vld [vmem:[#allocation8 + $0x3c] sm:$0xf]
    %v826 = vld [vmem:[#allocation8 + $0x40] sm:$0xf]
    %v827 = vld [vmem:[#allocation8 + $0x44] sm:$0xf]
    %v828 = vld [vmem:[#allocation8 + $0x48] sm:$0xf]
    %v829 = vld [vmem:[#allocation8 + $0x4c] sm:$0xf]
    %v830 = vld [vmem:[#allocation8 + $0x50] sm:$0xf]
    %v831 = vld [vmem:[#allocation8 + $0x54] sm:$0xf]
    %v832 = vld [vmem:[#allocation8 + $0x58] sm:$0xf]
    %v833 = vld [vmem:[#allocation8 + $0x5c] sm:$0xf]
    %v834 = vld [vmem:[#allocation8 + $0x60] sm:$0xf]
    %v835 = vld [vmem:[#allocation8 + $0x64] sm:$0xf]
    %v836 = vld [vmem:[#allocation8 + $0x68] sm:$0xf]
    %v837 = vld [vmem:[#allocation8 + $0x6c] sm:$0xf]
    %v838 = vld [vmem:[#allocation8 + $0x70] sm:$0xf]
    %v839 = vld [vmem:[#allocation8 + $0x74] sm:$0xf]
    %v840 = vld [vmem:[#allocation8 + $0x78] sm:$0xf]
    %v841 = vld [vmem:[#allocation8 + $0x7c] sm:$0xf]
    %v842 = vld [vmem:[#allocation8 + $0x80] sm:$0xf]
    %v843 = vld [vmem:[#allocation8 + $0x84] sm:$0xf]
    %v844 = vld [vmem:[#allocation8 + $0x88] sm:$0xf]
    %v845 = vld [vmem:[#allocation8 + $0x8c] sm:$0xf]
    %v846 = vld [vmem:[#allocation8 + $0x90] sm:$0xf]
    %v847 = vld [vmem:[#allocation8 + $0x94] sm:$0xf]
    %v848 = vld [vmem:[#allocation8 + $0x98] sm:$0xf]
    %v849 = vld [vmem:[#allocation8 + $0x9c] sm:$0xf]
    %v850 = vld [vmem:[#allocation8 + $0xa0] sm:$0xf]
    %v851 = vld [vmem:[#allocation8 + $0xa4] sm:$0xf]
    %v852 = vld [vmem:[#allocation8 + $0xa8] sm:$0xf]
    %v853 = vld [vmem:[#allocation8 + $0xac] sm:$0xf]
    %v854 = vld [vmem:[#allocation8 + $0xb0] sm:$0xf]
    %v855 = vld [vmem:[#allocation8 + $0xb4] sm:$0xf]
    %v856 = vld [vmem:[#allocation8 + $0xb8] sm:$0xf]
    %v857 = vld [vmem:[#allocation8 + $0xbc] sm:$0xf]
    %v906 = vunpack.c.l.b16 %v810
    %v907 = vunpack.c.l.b16 %v811
    %v908 = vunpack.c.l.b16 %v812
    %v909 = vunpack.c.l.b16 %v813
    %v910 = vunpack.c.l.b16 %v814
    %v911 = vunpack.c.l.b16 %v815
    %v912 = vunpack.c.l.b16 %v816
    %v913 = vunpack.c.l.b16 %v817
    %v914 = vunpack.c.l.b16 %v818
    %v915 = vunpack.c.l.b16 %v819
    %v916 = vunpack.c.l.b16 %v820
    %v917 = vunpack.c.l.b16 %v821
    %v918 = vunpack.c.l.b16 %v822
    %v919 = vunpack.c.l.b16 %v823
    %v920 = vunpack.c.l.b16 %v824
    %v921 = vunpack.c.l.b16 %v825
    %v922 = vunpack.c.l.b16 %v826
    %v923 = vunpack.c.l.b16 %v827
    %v924 = vunpack.c.l.b16 %v828
    %v925 = vunpack.c.l.b16 %v829
    %v926 = vunpack.c.l.b16 %v830
    %v927 = vunpack.c.l.b16 %v831
    %v928 = vunpack.c.l.b16 %v832
    %v929 = vunpack.c.l.b16 %v833
    %v930 = vunpack.c.l.b16 %v834
    %v931 = vunpack.c.l.b16 %v835
    %v932 = vunpack.c.l.b16 %v836
    %v933 = vunpack.c.l.b16 %v837
    %v934 = vunpack.c.l.b16 %v838
    %v935 = vunpack.c.l.b16 %v839
    %v936 = vunpack.c.l.b16 %v840
    %v937 = vunpack.c.l.b16 %v841
    %v938 = vunpack.c.l.b16 %v842
    %v939 = vunpack.c.l.b16 %v843
    %v940 = vunpack.c.l.b16 %v844
    %v941 = vunpack.c.l.b16 %v845
    %v942 = vunpack.c.l.b16 %v846
    %v943 = vunpack.c.l.b16 %v847
    %v944 = vunpack.c.l.b16 %v848
    %v945 = vunpack.c.l.b16 %v849
    %v946 = vunpack.c.l.b16 %v850
    %v947 = vunpack.c.l.b16 %v851
    %v948 = vunpack.c.l.b16 %v852
    %v949 = vunpack.c.l.b16 %v853
    %v950 = vunpack.c.l.b16 %v854
    %v951 = vunpack.c.l.b16 %v855
    %v952 = vunpack.c.l.b16 %v856
    %v953 = vunpack.c.l.b16 %v857
    %v954 = vpack.c.b16 %v907, %v906
    %v955 = vpack.c.b16 %v909, %v908
    %v956 = vpack.c.b16 %v911, %v910
    %v957 = vpack.c.b16 %v913, %v912
    %v958 = vpack.c.b16 %v915, %v914
    %v959 = vpack.c.b16 %v917, %v916
    %v960 = vpack.c.b16 %v919, %v918
    %v961 = vpack.c.b16 %v921, %v920
    %v962 = vpack.c.b16 %v923, %v922
    %v963 = vpack.c.b16 %v925, %v924
    %v964 = vpack.c.b16 %v927, %v926
    %v965 = vpack.c.b16 %v929, %v928
    %v966 = vpack.c.b16 %v931, %v930
    %v967 = vpack.c.b16 %v933, %v932
    %v968 = vpack.c.b16 %v935, %v934
    %v969 = vpack.c.b16 %v937, %v936
    %v970 = vpack.c.b16 %v939, %v938
    %v971 = vpack.c.b16 %v941, %v940
    %v972 = vpack.c.b16 %v943, %v942
    %v973 = vpack.c.b16 %v945, %v944
    %v974 = vpack.c.b16 %v947, %v946
    %v975 = vpack.c.b16 %v949, %v948
    %v976 = vpack.c.b16 %v951, %v950
    %v977 = vpack.c.b16 %v953, %v952
    %1002 = vmatprep.subr.bf16.mxu0 0
    %1003 = vmatpush1.bf16.msra.mxu0 %v961
    %1004 = vmatprep.subr.bf16.mxu0 0
    %1005 = vmatpush1.bf16.msra.mxu0 %v960
    %1006 = vmatprep.subr.bf16.mxu0 0
    %1007 = vmatpush1.bf16.msra.mxu0 %v959
    %1008 = vmatprep.subr.bf16.mxu0 0
    %1009 = vmatpush1.bf16.msra.mxu0 %v958
    %1010 = vmatprep.subr.bf16.mxu0 0
    %1011 = vmatpush1.bf16.msra.mxu0 %v957
    %1012 = vmatprep.subr.bf16.mxu0 0
    %1013 = vmatpush1.bf16.msra.mxu0 %v956
    %1014 = vmatprep.subr.bf16.mxu0 0
    %1015 = vmatpush1.bf16.msra.mxu0 %v955
    %1016 = vmatprep.subr.bf16.mxu0 0
    %1017 = vmatpush1.bf16.msra.mxu0 %v954
    %1018 = vmatprep.subr.bf16.mxu0 0
    %1019 = vmatpush2.bf16.msra.mxu0 %v969
    %1020 = vmatprep.subr.bf16.mxu0 0
    %1021 = vmatpush2.bf16.msra.mxu0 %v968
    %1022 = vmatprep.subr.bf16.mxu0 0
    %1023 = vmatpush2.bf16.msra.mxu0 %v967
    %1024 = vmatprep.subr.bf16.mxu0 0
    %1025 = vmatpush2.bf16.msra.mxu0 %v966
    %1026 = vmatprep.subr.bf16.mxu0 0
    %1027 = vmatpush2.bf16.msra.mxu0 %v965
    %1028 = vmatprep.subr.bf16.mxu0 0
    %1029 = vmatpush2.bf16.msra.mxu0 %v964
    %1030 = vmatprep.subr.bf16.mxu0 0
    %1031 = vmatpush2.bf16.msra.mxu0 %v963
    %1032 = vmatprep.subr.bf16.mxu0 0
    %1033 = vmatpush2.bf16.msra.mxu0 %v962
    %1034 = vmatprep.mubr.bf16.mxu0 %v798
    %1035 = vmatmul.mubr.bf16.gmra.mxu0 %v790
    %v1036 = vpop.f32.mrf.mxu0
    %v1037 = vadd.f32 0.0, %v1036
    %v1038 = vpop.f32.mrf.mxu0
    %v1039 = vpop.f32.mrf.mxu0
    %v1040 = vadd.f32 0.0, %v1039
    %v1041 = vpop.f32.mrf.mxu0
    %1042 = vmatprep.mubr.bf16.mxu0 %v799
    %1043 = vmatmul.mubr.bf16.gmra.mxu0 %v791
    %v1044 = vpop.f32.mrf.mxu0
    %v1045 = vadd.f32 0.0, %v1044
    %v1046 = vpop.f32.mrf.mxu0
    %v1047 = vpop.f32.mrf.mxu0
    %v1048 = vadd.f32 0.0, %v1047
    %v1049 = vpop.f32.mrf.mxu0
    %1050 = vdwg.mxu0
    %1051 = vmatprep.subr.bf16.mxu0 0
    %1052 = vmatpush1.bf16.msra.mxu0 %v977
    %1053 = vmatprep.subr.bf16.mxu0 0
    %1054 = vmatpush1.bf16.msra.mxu0 %v976
    %1055 = vmatprep.subr.bf16.mxu0 0
    %1056 = vmatpush1.bf16.msra.mxu0 %v975
    %1057 = vmatprep.subr.bf16.mxu0 0
    %1058 = vmatpush1.bf16.msra.mxu0 %v974
    %1059 = vmatprep.subr.bf16.mxu0 0
    %1060 = vmatpush1.bf16.msra.mxu0 %v973
    %1061 = vmatprep.subr.bf16.mxu0 0
    %1062 = vmatpush1.bf16.msra.mxu0 %v972
    %1063 = vmatprep.subr.bf16.mxu0 0
    %1064 = vmatpush1.bf16.msra.mxu0 %v971
    %1065 = vmatprep.subr.bf16.mxu0 0
    %1066 = vmatpush1.bf16.msra.mxu0 %v970
    %1067 = vmatprep.subr.bf16.mxu0 0
    %1068 = vmatpush2.bf16.msra.mxu0 0
    %1069 = vmatprep.subr.bf16.mxu0 0
    %1070 = vmatpush2.bf16.msra.mxu0 0
    %1071 = vmatprep.subr.bf16.mxu0 0
    %1072 = vmatpush2.bf16.msra.mxu0 0
    %1073 = vmatprep.subr.bf16.mxu0 0
    %1074 = vmatpush2.bf16.msra.mxu0 0
    %1075 = vmatprep.subr.bf16.mxu0 0
    %1076 = vmatpush2.bf16.msra.mxu0 0
    %1077 = vmatprep.subr.bf16.mxu0 0
    %1078 = vmatpush2.bf16.msra.mxu0 0
    %1079 = vmatprep.subr.bf16.mxu0 0
    %1080 = vmatpush2.bf16.msra.mxu0 0
    %1081 = vmatprep.subr.bf16.mxu0 0
    %1082 = vmatpush2.bf16.msra.mxu0 0
    %1083 = vmatprep.mubr.bf16.mxu0 0
    %1084 = vmatmul.mubr.bf16.gmra.mxu0 %v806
    %v1085 = vpop.f32.mrf.mxu0
    %v1086 = vadd.f32 %v1037, %v1085
    %v1087 = vpop.f32.mrf.mxu0
    %v1088 = vpop.f32.mrf.mxu0
    %v1089 = vadd.f32 %v1040, %v1088
    %v1090 = vpop.f32.mrf.mxu0
    %1091 = vmatprep.mubr.bf16.mxu0 0
    %1092 = vmatmul.mubr.bf16.gmra.mxu0 %v807
    %v1093 = vpop.f32.mrf.mxu0
    %v1094 = vadd.f32 %v1045, %v1093
    %v1095 = vpop.f32.mrf.mxu0
    %v1096 = vpop.f32.mrf.mxu0
    %v1097 = vadd.f32 %v1048, %v1096
    %v1098 = vpop.f32.mrf.mxu0
    %1099 = vdwg.mxu0
    %v1100 = vadd.f32 %v1086, %v1089
    %v1101 = vadd.f32 %v1100, %v1094
    %v1102 = vadd.f32 %v1101, %v1097
    %v1103 = vrot.slane %v1102, 4
    %v1104 = vadd.f32 %v1102, %v1103
    %v1105 = vrot.slane %v1104, 2
    %v1106 = vadd.f32 %v1104, %v1105
    %v1107 = vrot.slane %v1106, 1
    %v1108 = vadd.f32 %v1106, %v1107
    %1109 = vrot.lane.b32.xlu0 %v1108, 8
    %v1110 = vpop.permute.xlu0 %1109
    %v1111 = vadd.f32 %v1108, %v1110
    %1112 = vrot.lane.b32.xlu0 %v1111, 16
    %v1113 = vpop.permute.xlu0 %1112
    %v1114 = vadd.f32 %v1111, %v1113
    %1115 = vrot.lane.b32.xlu0 %v1114, 32
    %v1116 = vpop.permute.xlu0 %1115
    %v1117 = vadd.f32 %v1114, %v1116
    %1118 = vrot.lane.b32.xlu0 %v1117, 64
    %v1119 = vpop.permute.xlu0 %1118
    %v1120 = vadd.f32 %v1117, %v1119
    %v1121 = vmul.f32 %v1120, 0.001953125
    %v1122 = vlaneseq
    %v1123 = vshrl.u32 %v1122, 7
    %v1124 = vsub.s32 0, %v1123
    %v1125 = vrot.slane %v1121, %v1124
    %v1126 = vsub.f32 %v1086, %v1125
    %v1127 = vsub.f32 %v1089, %v1125
    %v1128 = vsub.f32 %v1094, %v1125
    %v1129 = vsub.f32 %v1097, %v1125
    %v1130 = vmul.f32 %v1126, %v1126
    %v1131 = vmul.f32 %v1127, %v1127
    %v1132 = vmul.f32 %v1128, %v1128
    %v1133 = vmul.f32 %v1129, %v1129
    %v1134 = vadd.f32 %v1130, %v1131
    %v1135 = vadd.f32 %v1134, %v1132
    %v1136 = vadd.f32 %v1135, %v1133
    %v1137 = vrot.slane %v1136, 4
    %v1138 = vadd.f32 %v1136, %v1137
    %v1139 = vrot.slane %v1138, 2
    %v1140 = vadd.f32 %v1138, %v1139
    %v1141 = vrot.slane %v1140, 1
    %v1142 = vadd.f32 %v1140, %v1141
    %1143 = vrot.lane.b32.xlu0 %v1142, 8
    %v1144 = vpop.permute.xlu0 %1143
    %v1145 = vadd.f32 %v1142, %v1144
    %1146 = vrot.lane.b32.xlu0 %v1145, 16
    %v1147 = vpop.permute.xlu0 %1146
    %v1148 = vadd.f32 %v1145, %v1147
    %1149 = vrot.lane.b32.xlu0 %v1148, 32
    %v1150 = vpop.permute.xlu0 %1149
    %v1151 = vadd.f32 %v1148, %v1150
    %1152 = vrot.lane.b32.xlu0 %v1151, 64
    %v1153 = vpop.permute.xlu0 %1152
    %v1154 = vadd.f32 %v1151, %v1153
    %v1155 = vmul.f32 %v1154, 0.001953125
    %v1156 = vld [vmem:[%s5] sm:$0x1]
    %v1157 = vadd.f32 %v1155, 1e-05
    %v1158 = vrsqrt.pop %v1157
    %v1159 = vmul.f32 %v1156, %v1158
    %v1161 = vlaneseq
    %v1162 = vshrl.u32 %v1161, 7
    %v1163 = vsub.s32 0, %v1162
    %v1164 = vrot.slane %v1159, %v1163
    %v1166 = vmul.f32 %v1126, %v1164
    %v1167 = vmul.f32 %v1127, %v1164
    %v1168 = vmul.f32 %v1128, %v1164
    %v1169 = vmul.f32 %v1129, %v1164
    %v1170 = vld [vmem:[%s6] sm:$0x1]
    %v1172 = vlaneseq
    %v1173 = vshrl.u32 %v1172, 7
    %v1174 = vsub.s32 0, %v1173
    %v1175 = vrot.slane %v1170, %v1174
    %v1177 = vadd.f32 %v1166, %v1175
    %v1178 = vadd.f32 %v1167, %v1175
    %v1179 = vadd.f32 %v1168, %v1175
    %v1180 = vadd.f32 %v1169, %v1175
    %v1181 = vld [vmem:[#allocation3] sm:$0xff]
    %v1182 = vld [vmem:[#allocation3 + $0x8] sm:$0xff]
    %v1183 = vld [vmem:[#allocation3 + $0x10] sm:$0xff]
    %v1184 = vld [vmem:[#allocation3 + $0x18] sm:$0xff]
    %v1185 = vadd.f32 %v1177, %v1181
    %v1186 = vadd.f32 %v1178, %v1182
    %v1187 = vadd.f32 %v1179, %v1183
    %v1188 = vadd.f32 %v1180, %v1184
    %v1189 = vmax.f32 %v1185, 0.0
    %v1190 = vmax.f32 %v1186, 0.0
    %v1191 = vmax.f32 %v1187, 0.0
    %v1192 = vmax.f32 %v1188, 0.0
    %1193 = vst [vmem:[#allocation9] sm:$0xff] %v1189
    %1194 = vst [vmem:[#allocation9 + $0x8] sm:$0xff] %v1190
    %1195 = vst [vmem:[#allocation9 + $0x10] sm:$0xff] %v1191
    %1196 = vst [vmem:[#allocation9 + $0x18] sm:$0xff] %v1192
    // Predicated region
    $region42: #{tpu_custom_call.1} parent=1 // pred_check
      _
    $region43: #{tpu_custom_call.1} parent=1 // pred_check_branch
      %1198 = sbr.rel (0) target = $region45
    $region44: #{tpu_custom_call.1} parent=1 // pred_region
      %s1200 = ssub.s32 512, 512
      %1201 = vsyncadd [#allocation5], %s1200
      %s1202 = sshll.u32 [#allocation9], 4
      %s1203 = int_to_ptr.vmem [resolvable:$true] %s1202
      %1208 = dma.vmem_to_hbm [thread:$0]  %s1203, 512, %s7, [#allocation5], 128, 128, 8
    $region45: #{tpu_custom_call.1} parent=1 // pred_fallthru
      _
    // Predicated region
    $region46: #{tpu_custom_call.1} parent=1 // pred_check
      _
    $region47: #{tpu_custom_call.1} parent=1 // pred_check_branch
      %1210 = sbr.rel (0) target = $region49
    $region48: #{tpu_custom_call.1} parent=1 // pred_region
      %1211 = dma.done [#allocation5], 512
    $region49: #{tpu_custom_call.1} parent=1 // pred_fallthru
      _
    %1212 = vsyncpa [#allocation4], 1
    %1213 = vsyncpa [#allocation7], 1
    %1214 = vsyncpa [#allocation5], 1

</llo_original>
